<compile_context>
chip_gen: v5e
topology: v5e:2x2
jax: 0.10.0
libtpu: 0.0.40
codegen_flags: <defaults>
</compile_context>

<pallas_src>
import functools

import jax
import jax.numpy as jnp
from jax.experimental import pallas as pl
from jax.experimental.pallas import tpu as pltpu

_MIB = 1024 * 1024


def _round_up(x, m):
    return ((x + m - 1) // m) * m


def _vmem_capacity_bytes():
    """Physical VMEM per TensorCore; conservative (v7x 64 MiB) fallback."""
    try:
        return int(pltpu.get_tpu_info().vmem_capacity_bytes)
    except Exception:
        return 64 * _MIB


def _policy_kernel(x_ref, w1_ref, b1_ref, wh_ref, bh_ref, out_ref, *,
                   max_action, action_dim):
    # fc1 + ReLU (f32 accumulation regardless of operand dtype).
    x = x_ref[...]
    h = jnp.dot(x, w1_ref[...], preferred_element_type=jnp.float32) + b1_ref[...]
    h = jnp.maximum(h, 0.0)

    # Fused heads: one matmul producing (TB, P) = [mu_lin | std_lin | pad].
    heads = (jnp.dot(h.astype(wh_ref.dtype), wh_ref[...],
                     preferred_element_type=jnp.float32) + bh_ref[...])

    # mu path: max_action * tanh(.)
    mu_all = max_action * jnp.tanh(heads)
    # std path: single-branch numerically-stable softplus(.) + 1e-4.
    # NOTE: for P <= 128 (one lane group) computing both activations over the
    # full tile costs the same vreg count as slicing; if 2*action_dim ever
    # exceeds 128 lanes, slice the head tile at the 128-lane boundary so each
    # transcendental only touches its half (EUP has a single VLIW slot).
    sp = jnp.maximum(heads, 0.0) + jnp.log1p(jnp.exp(-jnp.abs(heads)))
    std_all = sp + 1e-4

    # Lane-select: first A lanes -> mu, remaining lanes -> std (incl. any lane
    # padding, which the wrapper slices away).  Avoids lane-slice/concat XLU.
    lane = jax.lax.broadcasted_iota(jnp.int32, heads.shape, dimension=1)
    out_ref[...] = jnp.where(lane < action_dim, mu_all, std_all).astype(out_ref.dtype)


def policy_net_continuous(x, params, max_action, *, block_batch=None,
                          use_bf16=False, bf16_out=False, pad_head_lanes=False):
    """Forward pass of PolicyNetContinuous -> (mu, std), each (B, action_dim).

    x: (B, state_dim); params: w1 (S,H), b1 (H,), w_mu (H,A), b_mu (A,),
    w_std (H,A), b_std (A,).  Weights are (in, out), transposed vs torch.

    use_bf16:       bf16 MXU operands for x / w1 / head weights (f32 accumulate,
                    f32 elementwise).  Valid on every generation incl. v5e.
    bf16_out:       emit the packed output slab as bf16 (halves writeback).
    pad_head_lanes: zero-pad the fused head to a 128-lane-dense width so output
                    stores are unmasked vst (profile-gated: multiplies output
                    writeback bytes by 128/(2A)).
    """
    B, S = x.shape
    H = params["w1"].shape[1]
    A = params["w_mu"].shape[1]

    # Fused head weights / biases: (H, P) and (1, P), optionally lane-padded.
    w_heads = jnp.concatenate([params["w_mu"], params["w_std"]], axis=1)
    b_heads = jnp.concatenate([params["b_mu"], params["b_std"]]).reshape(1, 2 * A)
    if pad_head_lanes:
        P = max(128, _round_up(2 * A, 128))
        w_heads = jnp.pad(w_heads, ((0, 0), (0, P - 2 * A)))
        b_heads = jnp.pad(b_heads, ((0, 0), (0, P - 2 * A)))
    else:
        P = 2 * A
    b1 = params["b1"].reshape(1, H)
    w1 = params["w1"]

    if use_bf16:
        x = x.astype(jnp.bfloat16)
        w1 = w1.astype(jnp.bfloat16)
        w_heads = w_heads.astype(jnp.bfloat16)

    out_dtype = jnp.bfloat16 if bf16_out else jnp.float32
    x_item = w_item = 2 if use_bf16 else 4
    out_item = 2 if bf16_out else 4

    # ---- Generation-aware tile size & VMEM budgeting ------------------------
    vmem_cap = _vmem_capacity_bytes()
    big_vmem = vmem_cap >= 100 * _MIB          # v5e/v6e: 128 MiB, v7x: 64 MiB
    if block_batch is None:
        block_batch = 1024 if big_vmem else 256
    ceiling = int(vmem_cap * (0.75 if big_vmem else 0.60))  # headroom for scratch

    # Grid-invariant operands are single-buffered (pl.Buffered(1) below).
    weight_bytes = (S * H + H * P) * w_item + (H + P) * 4

    def footprint(tb):
        return (weight_bytes
                + 2 * tb * S * x_item       # x tile, double-buffered
                + 2 * tb * P * out_item     # out tile, double-buffered
                + tb * H * 4)               # fc1 activation intermediate

    TB = min(block_batch, _round_up(B, 8))
    while TB > 8 and footprint(TB) > ceiling:
        TB = _round_up(TB // 2, 8)
    # TODO(synk): if the resident weights alone exceed the VMEM ceiling (very
    # large hidden_dim on v7x's 64 MiB), add an inner "arbitrary" grid axis
    # tiling H with a (TB, P) f32 accumulator instead of one-shot weights.

    # Guarantee >= 2 batch tiles when possible so ("parallel",) actually shards
    # across both v7x TensorCores; measured no-op cost on single-TC v5e/v6e.
    if 16 <= B <= TB:
        TB = min(TB, _round_up(pl.cdiv(B, 2), 8))
    elif B < 16:
        TB = B

    grid = (pl.cdiv(B, TB),)
    vmem_limit = int(min(max(vmem_cap - 8 * _MIB, 16 * _MIB),
                         max(footprint(TB) * 5 // 4 + 8 * _MIB, 32 * _MIB)))

    kernel = functools.partial(_policy_kernel, max_action=float(max_action),
                               action_dim=A)

    cost = pl.CostEstimate(
        flops=2 * B * (S * H + H * P),
        transcendentals=3 * B * P,  # tanh + exp + log1p over the head tile
        bytes_accessed=(x_item * B * S + w_item * (S * H + H * P)
                        + 4 * (H + P) + out_item * B * P),
    )

    out = pl.pallas_call(
        kernel,
        out_shape=jax.ShapeDtypeStruct((B, P), out_dtype),
        grid=grid,
        in_specs=[
            # x: batch-tiled, default double-buffered pipelining.
            pl.BlockSpec((TB, S), lambda i: (i, 0)),
            # Grid-invariant operands: single-buffer (constant index_map, so
            # the default 2-deep pipelining would only duplicate them in VMEM).
            pl.BlockSpec((S, H), lambda i: (0, 0), pipeline_mode=pl.Buffered(1)),
            pl.BlockSpec((1, H), lambda i: (0, 0), pipeline_mode=pl.Buffered(1)),
            pl.BlockSpec((H, P), lambda i: (0, 0), pipeline_mode=pl.Buffered(1)),
            pl.BlockSpec((1, P), lambda i: (0, 0), pipeline_mode=pl.Buffered(1)),
        ],
        out_specs=pl.BlockSpec((TB, P), lambda i: (i, 0)),
        compiler_params=pltpu.CompilerParams(
            dimension_semantics=("parallel",),   # megacore sharding on v7x
            vmem_limit_bytes=vmem_limit,
        ),
        cost_estimate=cost,
    )(x, w1, b1, w_heads, b_heads)

    # Strict [:, :A] / [:, A:2A] slices (padded lanes, if any, are discarded).
    return out[:, :A], out[:, A:2 * A]


def init_params(key, state_dim, hidden_dim, action_dim):
    """Mirror torch.nn.Linear default init U(-1/sqrt(fan_in), 1/sqrt(fan_in))."""
    k1, k2, k3, k4, k5, k6 = jax.random.split(key, 6)

    def unif(k, shape, fan_in):
        bound = 1.0 / jnp.sqrt(fan_in)
        return jax.random.uniform(k, shape, jnp.float32, -bound, bound)

    return {
        "w1": unif(k1, (state_dim, hidden_dim), state_dim),
        "b1": unif(k2, (hidden_dim,), state_dim),
        "w_mu": unif(k3, (hidden_dim, action_dim), hidden_dim),
        "b_mu": unif(k4, (action_dim,), hidden_dim),
        "w_std": unif(k5, (hidden_dim, action_dim), hidden_dim),
        "b_std": unif(k6, (action_dim,), hidden_dim),
    }


def _reference(x, params, max_action):
    h = jax.nn.relu(x @ params["w1"] + params["b1"])
    mu = max_action * jnp.tanh(h @ params["w_mu"] + params["b_mu"])
    std = jax.nn.softplus(h @ params["w_std"] + params["b_std"]) + 1e-4
    return mu, std


if __name__ == "__main__":
    batch, state_dim, hidden_dim, action_dim = 2, 8, 32, 4
    max_action = 2.0

    key = jax.random.PRNGKey(0)
    kx, kp, kx2, kx3 = jax.random.split(key, 4)
    x = jax.random.normal(kx, (batch, state_dim), jnp.float32)
    params = init_params(kp, state_dim, hidden_dim, action_dim)

    # 1) Small-shape single-block check, f32 path, tight tolerance.
    mu, std = policy_net_continuous(x, params, max_action)
    jax.block_until_ready((mu, std))
    mu_ref, std_ref = _reference(x, params, max_action)
    assert mu.shape == (batch, action_dim) and std.shape == (batch, action_dim)
    assert jnp.allclose(mu, mu_ref, atol=1e-5), "mu mismatch"
    assert jnp.allclose(std, std_ref, atol=1e-5), "std mismatch"
    assert bool(jnp.all(std > 0)), "std must be positive"

    # 2) Multi-block check: explicit block_batch, exercises a partial last tile.
    x2 = jax.random.normal(kx2, (200, state_dim), jnp.float32)
    mu2, std2 = policy_net_continuous(x2, params, max_action, block_batch=64)
    jax.block_until_ready((mu2, std2))
    mu2_ref, std2_ref = _reference(x2, params, max_action)
    assert jnp.allclose(mu2, mu2_ref, atol=1e-5), "tiled mu mismatch"
    assert jnp.allclose(std2, std2_ref, atol=1e-5), "tiled std mismatch"

    # 3) Auto tile selection incl. the >=2-tile megacore split (B=48 -> 2 tiles).
    x3 = jax.random.normal(kx3, (48, state_dim), jnp.float32)
    mu3, std3 = policy_net_continuous(x3, params, max_action)
    jax.block_until_ready((mu3, std3))
    mu3_ref, std3_ref = _reference(x3, params, max_action)
    assert jnp.allclose(mu3, mu3_ref, atol=1e-5), "split mu mismatch"
    assert jnp.allclose(std3, std3_ref, atol=1e-5), "split std mismatch"

    # 4) Lane-dense padded head output (profile-gated option) stays exact.
    mu4, std4 = policy_net_continuous(x2, params, max_action, block_batch=64,
                                      pad_head_lanes=True)
    jax.block_until_ready((mu4, std4))
    assert jnp.allclose(mu4, mu2_ref, atol=1e-5), "padded mu mismatch"
    assert jnp.allclose(std4, std2_ref, atol=1e-5), "padded std mismatch"

    # 5) bf16-MXU path (valid on all generations) compiles & runs; sanity only.
    mu_bf, std_bf = policy_net_continuous(x, params, max_action, use_bf16=True)
    jax.block_until_ready((mu_bf, std_bf))
    assert bool(jnp.all(jnp.isfinite(mu_bf))) and bool(jnp.all(std_bf > 0))

    print("KERNEL_OK")
</pallas_src>

<mosaic_0001>
module attributes {stable_mosaic.version = 11 : i64} {
  func.func @_policy_kernel(%arg0: i32, %arg1: memref<2x8xf32, #tpu.memory_space<vmem>>, %arg2: memref<8x32xf32, #tpu.memory_space<vmem>>, %arg3: memref<1x32xf32, #tpu.memory_space<vmem>>, %arg4: memref<32x8xf32, #tpu.memory_space<vmem>>, %arg5: memref<1x8xf32, #tpu.memory_space<vmem>>, %arg6: memref<2x8xf32, #tpu.memory_space<vmem>>) attributes {dimension_semantics = [#tpu.dimension_semantics<parallel>], iteration_bounds = array<i64: 1>, scalar_prefetch = 0 : i64, scratch_operands = 0 : i64, tpu.core_type = #tpu.core_type<tc>, window_params = [{transform_indices = @transform_0, window_bounds = array<i64: 2, 8>}, {pipeline_mode = #tpu.pipeline_mode<synchronous>, transform_indices = @transform_1, window_bounds = array<i64: 8, 32>}, {pipeline_mode = #tpu.pipeline_mode<synchronous>, transform_indices = @transform_2, window_bounds = array<i64: 1, 32>}, {pipeline_mode = #tpu.pipeline_mode<synchronous>, transform_indices = @transform_3, window_bounds = array<i64: 32, 8>}, {pipeline_mode = #tpu.pipeline_mode<synchronous>, transform_indices = @transform_4, window_bounds = array<i64: 1, 8>}, {transform_indices = @transform_5, window_bounds = array<i64: 2, 8>}]} {
    %c0 = arith.constant 0 : index
    %c0_0 = arith.constant 0 : index
    %0 = vector.load %arg1[%c0, %c0_0] : memref<2x8xf32, #tpu.memory_space<vmem>>, vector<2x8xf32>
    %c0_1 = arith.constant 0 : index
    %c0_2 = arith.constant 0 : index
    %1 = vector.load %arg2[%c0_1, %c0_2] : memref<8x32xf32, #tpu.memory_space<vmem>>, vector<8x32xf32>
    %cst = arith.constant dense<0.000000e+00> : vector<2x32xf32>
    %2 = tpu.matmul %0, %1, %cst {dimension_numbers = #tpu.dot_dimension_numbers<[1], [0], [0], [1], [0, 0, 1, 1], [], []>} : vector<2x8xf32>, vector<8x32xf32>, vector<2x32xf32> -> vector<2x32xf32>
    %c0_3 = arith.constant 0 : index
    %c0_4 = arith.constant 0 : index
    %3 = vector.load %arg3[%c0_3, %c0_4] : memref<1x32xf32, #tpu.memory_space<vmem>>, vector<1x32xf32>
    %4 = vector.broadcast %3 : vector<1x32xf32> to vector<2x32xf32>
    %5 = arith.addf %2, %4 : vector<2x32xf32>
    %cst_5 = arith.constant 0.000000e+00 : f32
    %6 = vector.broadcast %cst_5 : f32 to vector<2x32xf32>
    %7 = arith.maximumf %5, %6 : vector<2x32xf32>
    %c0_6 = arith.constant 0 : index
    %c0_7 = arith.constant 0 : index
    %8 = vector.load %arg4[%c0_6, %c0_7] : memref<32x8xf32, #tpu.memory_space<vmem>>, vector<32x8xf32>
    %cst_8 = arith.constant dense<0.000000e+00> : vector<2x8xf32>
    %9 = tpu.matmul %7, %8, %cst_8 {dimension_numbers = #tpu.dot_dimension_numbers<[1], [0], [0], [1], [0, 0, 1, 1], [], []>} : vector<2x32xf32>, vector<32x8xf32>, vector<2x8xf32> -> vector<2x8xf32>
    %c0_9 = arith.constant 0 : index
    %c0_10 = arith.constant 0 : index
    %10 = vector.load %arg5[%c0_9, %c0_10] : memref<1x8xf32, #tpu.memory_space<vmem>>, vector<1x8xf32>
    %11 = vector.broadcast %10 : vector<1x8xf32> to vector<2x8xf32>
    %12 = arith.addf %9, %11 : vector<2x8xf32>
    %13 = math.tanh %12 : vector<2x8xf32>
    %cst_11 = arith.constant 2.000000e+00 : f32
    %14 = vector.broadcast %cst_11 : f32 to vector<2x8xf32>
    %15 = arith.mulf %14, %13 : vector<2x8xf32>
    %cst_12 = arith.constant 0.000000e+00 : f32
    %16 = vector.broadcast %cst_12 : f32 to vector<2x8xf32>
    %17 = arith.maximumf %12, %16 : vector<2x8xf32>
    %18 = math.absf %12 : vector<2x8xf32>
    %cst_13 = arith.constant 0.000000e+00 : f32
    %19 = vector.broadcast %cst_13 : f32 to vector<2x8xf32>
    %20 = arith.subf %19, %18 : vector<2x8xf32>
    %21 = math.exp %20 : vector<2x8xf32>
    %22 = math.log1p %21 : vector<2x8xf32>
    %23 = arith.addf %17, %22 : vector<2x8xf32>
    %cst_14 = arith.constant 9.99999974E-5 : f32
    %24 = vector.broadcast %cst_14 : f32 to vector<2x8xf32>
    %25 = arith.addf %23, %24 : vector<2x8xf32>
    %26 = tpu.iota {dimensions = array<i32: 1>} : vector<2x8xi32>
    %c4_i32 = arith.constant 4 : i32
    %27 = vector.broadcast %c4_i32 : i32 to vector<2x8xi32>
    %28 = arith.cmpi slt, %26, %27 : vector<2x8xi32>
    %29 = arith.select %28, %15, %25 : vector<2x8xi1>, vector<2x8xf32>
    %c0_15 = arith.constant 0 : index
    %c0_16 = arith.constant 0 : index
    %30 = vector.load %arg6[%c0_15, %c0_16] : memref<2x8xf32, #tpu.memory_space<vmem>>, vector<2x8xf32>
    tpu.vector_store %arg6[%c0_15, %c0_16], %29 {strides = array<i32>} : memref<2x8xf32, #tpu.memory_space<vmem>>, vector<2x8xf32>,
    return
  }
  func.func @transform_0(%arg0: i32) -> (i32, i32) {
    %c0_i32 = arith.constant 0 : i32
    %c0_i32_0 = arith.constant 0 : i32
    return %arg0, %c0_i32 : i32, i32
  }
  func.func @transform_1(%arg0: i32) -> (i32, i32) {
    %c0_i32 = arith.constant 0 : i32
    %c0_i32_0 = arith.constant 0 : i32
    %c0_i32_1 = arith.constant 0 : i32
    return %c0_i32, %c0_i32_0 : i32, i32
  }
  func.func @transform_2(%arg0: i32) -> (i32, i32) {
    %c0_i32 = arith.constant 0 : i32
    %c0_i32_0 = arith.constant 0 : i32
    %c0_i32_1 = arith.constant 0 : i32
    return %c0_i32, %c0_i32_0 : i32, i32
  }
  func.func @transform_3(%arg0: i32) -> (i32, i32) {
    %c0_i32 = arith.constant 0 : i32
    %c0_i32_0 = arith.constant 0 : i32
    %c0_i32_1 = arith.constant 0 : i32
    return %c0_i32, %c0_i32_0 : i32, i32
  }
  func.func @transform_4(%arg0: i32) -> (i32, i32) {
    %c0_i32 = arith.constant 0 : i32
    %c0_i32_0 = arith.constant 0 : i32
    %c0_i32_1 = arith.constant 0 : i32
    return %c0_i32, %c0_i32_0 : i32, i32
  }
  func.func @transform_5(%arg0: i32) -> (i32, i32) {
    %c0_i32 = arith.constant 0 : i32
    %c0_i32_0 = arith.constant 0 : i32
    return %arg0, %c0_i32 : i32, i32
  }
}

</mosaic_0001>

<llo_original>
// kernel: tpu_custom_call.1
$region0: #{tpu_custom_call.1}
  #allocation0 [shape = 'u32[]', space=smem, size = 0x4, offset = 0x4, fixed_abs, tag = 'smem constant byte address 0x4 - core index']
  #allocation1 [shape = 'u32[72,128]{1,0:T(1,128)}', space=vmem, size = 0x9000, scoped, tag = 'internal scratch']
  %s0 = inlined_call_operand.vmem [shape: f32[2,8], index: 0, kind: input, shape index: {}]
  %s1 = inlined_call_operand.vmem [shape: f32[8,32], index: 1, kind: input, shape index: {}]
  %s2 = inlined_call_operand.vmem [shape: f32[1,32], index: 2, kind: input, shape index: {}]
  %s3 = inlined_call_operand.vmem [shape: f32[32,8], index: 3, kind: input, shape index: {}]
  %s4 = inlined_call_operand.vmem [shape: f32[1,8], index: 4, kind: input, shape index: {}]
  %s5 = inlined_call_operand.hbm [shape: f32[2,8], index: 5, kind: output, shape index: {}]
  %s6 = sld [smem:[#allocation0]]
  $region30: #{tpu_custom_call.1} parent=0
    _
  %s8 = ssub.s32 1, %s6
  %s9 = scalar_select 0, %s8, %s6
  $region1: #{tpu_custom_call.1} parent=0
    #allocation2 [shape = 'u8[1024]{0}', space=vmem, size = 0x400, scoped, tag = 'output window, operand 0, single buffered']
    #allocation3 [shape = 's32[1]{0}', space=sflag, size = 0x4, scoped, tag = 'scoped memory for tpu_custom_call.1']
    %10 = vsyncpa [#allocation3], 0
    // Predicated region
    $region2: #{tpu_custom_call.1} parent=1 // pred_check
      _
    $region3: #{tpu_custom_call.1} parent=1 // pred_check_branch
      %12 = sbr.rel (0) target = $region5
    $region4: #{tpu_custom_call.1} parent=1 // pred_region
      _
    $region5: #{tpu_custom_call.1} parent=1 // pred_fallthru
      _
    // Predicated region
    $region6: #{tpu_custom_call.1} parent=1 // pred_check
      _
    $region7: #{tpu_custom_call.1} parent=1 // pred_check_branch
      %14 = sbr.rel (0) target = $region9
    $region8: #{tpu_custom_call.1} parent=1 // pred_region
      _
    $region9: #{tpu_custom_call.1} parent=1 // pred_fallthru
      _
    // Predicated region
    $region10: #{tpu_custom_call.1} parent=1 // pred_check
      _
    $region11: #{tpu_custom_call.1} parent=1 // pred_check_branch
      %16 = sbr.rel (0) target = $region13
    $region12: #{tpu_custom_call.1} parent=1 // pred_region
      _
    $region13: #{tpu_custom_call.1} parent=1 // pred_fallthru
      _
    // Predicated region
    $region14: #{tpu_custom_call.1} parent=1 // pred_check
      _
    $region15: #{tpu_custom_call.1} parent=1 // pred_check_branch
      %18 = sbr.rel (0) target = $region17
    $region16: #{tpu_custom_call.1} parent=1 // pred_region
      _
    $region17: #{tpu_custom_call.1} parent=1 // pred_fallthru
      _
    // Predicated region
    $region18: #{tpu_custom_call.1} parent=1 // pred_check
      _
    $region19: #{tpu_custom_call.1} parent=1 // pred_check_branch
      %20 = sbr.rel (0) target = $region21
    $region20: #{tpu_custom_call.1} parent=1 // pred_region
      _
    $region21: #{tpu_custom_call.1} parent=1 // pred_fallthru
      _
    %v21 = vld [vmem:[%s0] sm:$0x3]
    %v22 = vld [vmem:[%s1] sm:$0xff]
    %v23 = vld [vmem:[%s2] sm:$0x1]
    %v25 = vperm.slane %v23, 0
    %vm27 = vcmask 64512
    %v29 = vsel %vm27, %v21, 0
    %31 = vmatpush.msra.mxu0 0.0
    %32 = vmatpush.msra.mxu0 0.0
    %33 = vmatpush.msra.mxu0 0.0
    %34 = vmatpush.msra.mxu0 0.0
    %35 = vmatpush.msra.mxu0 0.0
    %36 = vmatpush.msra.mxu0 0.0
    %37 = vmatpush.msra.mxu0 0.0
    %38 = vmatpush.msra.mxu0 0.0
    %39 = vmatpush.msra.mxu0 0.0
    %40 = vmatpush.msra.mxu0 0.0
    %41 = vmatpush.msra.mxu0 0.0
    %42 = vmatpush.msra.mxu0 0.0
    %43 = vmatpush.msra.mxu0 0.0
    %44 = vmatpush.msra.mxu0 0.0
    %45 = vmatpush.msra.mxu0 0.0
    %46 = vmatpush.msra.mxu0 %v22
    %47 = vmatmul.f32.gmra.mxu0 %v29
    %v48 = vpop.f32.mrf.mxu0
    %v49 = vadd.f32 %v25, %v48
    %50 = vdwg.mxu0
    %v51 = vmax.f32 %v49, 0.0
    %v52 = vld [vmem:[%s3] sm:$0xff]
    %v53 = vld [vmem:[%s3 + $0x8] sm:$0xff]
    %v54 = vld [vmem:[%s3 + $0x10] sm:$0xff]
    %v55 = vld [vmem:[%s3 + $0x18] sm:$0xff]
    %v56 = vld [vmem:[%s4] sm:$0x1]
    %v58 = vperm.slane %v56, 0
    %vm60 = vcmask 261120
    %v62 = vsel %vm60, %v51, 0
    %64 = vmatpush.msra.mxu0 0.0
    %65 = vmatpush.msra.mxu0 0.0
    %66 = vmatpush.msra.mxu0 0.0
    %67 = vmatpush.msra.mxu0 0.0
    %68 = vmatpush.msra.mxu0 0.0
    %69 = vmatpush.msra.mxu0 0.0
    %70 = vmatpush.msra.mxu0 0.0
    %71 = vmatpush.msra.mxu0 0.0
    %72 = vmatpush.msra.mxu0 0.0
    %73 = vmatpush.msra.mxu0 0.0
    %74 = vmatpush.msra.mxu0 0.0
    %75 = vmatpush.msra.mxu0 0.0
    %76 = vmatpush.msra.mxu0 %v55
    %77 = vmatpush.msra.mxu0 %v54
    %78 = vmatpush.msra.mxu0 %v53
    %79 = vmatpush.msra.mxu0 %v52
    %80 = vmatmul.f32.gmra.mxu0 %v62
    %v81 = vpop.f32.mrf.mxu0
    %v82 = vadd.f32 %v58, %v81
    %83 = vdwg.mxu0
    %v84 = vtanh.pop %v82
    %v85 = vmul.f32 %v84, 2.0
    %v86 = vmax.f32 %v82, 0.0
    %v87 = vand.u32 2147483647, %v82
    %v88 = vsub.f32 0.0, %v87
    %v89 = vmul.f32 %v88, 1.442695
    %v90 = vpow.pop %v89
    %v91 = vadd.f32 %v90, 1.0
    %v92 = vlog2.pop %v91
    %v93 = vmul.f32 %v92, 0.6931472
    %v94 = vmul.f32 -0.5, %v90
    %v95 = vadd.f32 %v94, 1.0
    %v96 = vmul.f32 %v95, %v90
    %v97 = vand.u32 2147483647, %v90
    %vm98 = vcmp.lt.f32.partialorder %v97, 0.0004427343
    %v99 = vsel %vm98, %v96, %v93
    %v100 = vadd.f32 %v86, %v99
    %v101 = vadd.f32 %v100, 0.0001
    %v102 = vlaneseq
    %v103 = vand.u32 %v102, 127
    %vm104 = vcmp.lt.s32.totalorder %v103, 4
    %v105 = vsel %vm104, %v85, %v101
    %vm106 = vcmask 58368
    %107 = vst.msk [vmem:[#allocation2] sm:$0x3] %vm106, %v105
    // Predicated region
    $region22: #{tpu_custom_call.1} parent=1 // pred_check
      _
    $region23: #{tpu_custom_call.1} parent=1 // pred_check_branch
      %109 = sbr.rel (0) target = $region25
    $region24: #{tpu_custom_call.1} parent=1 // pred_region
      %111 = vsyncadd [#allocation3], 0
      %s113 = sshll.u32 [#allocation2], 4
      %s114 = int_to_ptr.vmem [resolvable:$true] %s113
      %s115 = sshll.u32 %s5, 4
      %s116 = int_to_ptr.hbm [resolvable:$true] %s115
      %118 = dma.vmem_to_hbm [thread:$0]  %s114, 32, %s116, [#allocation3]
    $region25: #{tpu_custom_call.1} parent=1 // pred_fallthru
      _
    // Predicated region
    $region26: #{tpu_custom_call.1} parent=1 // pred_check
      _
    $region27: #{tpu_custom_call.1} parent=1 // pred_check_branch
      %120 = sbr.rel (0) target = $region29
    $region28: #{tpu_custom_call.1} parent=1 // pred_region
      %122 = dma.done [#allocation3], 32
    $region29: #{tpu_custom_call.1} parent=1 // pred_fallthru
      _
    %123 = vsyncpa [#allocation3], 1

</llo_original>
